<compile_context>
chip_gen: v6e
topology: v6e:2x2x1
jax: 0.10.0
libtpu: 0.0.40
codegen_flags: <defaults>
</compile_context>

<pallas_src>
import functools

import jax
import jax.numpy as jnp
import numpy as np
from jax.experimental import pallas as pl
from jax.experimental.pallas import tpu as pltpu


def _round_up(x, m):
    return ((x + m - 1) // m) * m


def _pick_v_tile(V):
    # Largest lane-dense tile that evenly divides V; else a single full-width
    # block (legal because block == full array dim).
    for tv in (1024, 512, 256, 128):
        if V >= tv and V % tv == 0:
            return tv
    return V


# In-kernel layout (2-D row-major, feature dim on lanes):
#   vec slab rows: 0: xh = [inp (V), h0 (O)]   1: c0 (O)
#                  2: b_lstm (4O)              3: a_we (Hd)    4..7: zero pad
#   w_xh    : (V+O, 4O) = [w_ih[:, Hd:].T ; w_hh.T]    (bf16)
#   w_ctx   : (Hd, 4O)  = w_ih[:, :Hd].T               (bf16)
#   w_final : (O, V)    = final_w.T                    (bf16), V-tiled
#   outputs : logits (1, V) V-tiled ; state slab (8, W_state) f32 with
#             row 0: h_new (O), row 1: c_new (O), row 2: probs (L), rest zero.
def attn_decoder_kernel(vec_ref, enc_ref, w_xh_ref, w_ctx_ref, w_fin_ref,
                        b_fin_ref, logits_ref, state_ref, *, O, Hd, V, L):
    j = pl.program_id(0)

    # Attention + single LSTM step: computed once (first vocab tile); results
    # live in the resident `state` output block for the remaining tiles.
    @pl.when(j == 0)
    def _():
        state_ref[...] = jnp.zeros_like(state_ref)   # deterministic writeback

        xh = vec_ref[0:1, :V + O]        # (1, V+O)  [inp, h0]
        c0 = vec_ref[1:2, :O]            # (1, O)
        b_lstm = vec_ref[2:3, :4 * O]    # (1, 4O)   b_ih + b_hh
        a_we = vec_ref[3:4, :Hd]         # (1, Hd)   attn.weight[:, O:]

        # Gate contribution that does not depend on attention: issue it first
        # so the MXU work overlaps the scores -> softmax -> ctx chain.
        gates = jnp.dot(xh.astype(w_xh_ref.dtype), w_xh_ref[...],
                        preferred_element_type=jnp.float32) + b_lstm   # (1, 4O)

        enc = enc_ref[...]               # (L, Hd) f32

        # Attention scores.  The h-dependent term + bias is constant across the
        # sequence and softmax is shift-invariant, so it is dropped (exact).
        scores = jax.lax.dot_general(
            a_we, enc, dimension_numbers=(((1,), (1,)), ((), ())),
            preferred_element_type=jnp.float32)                         # (1, L)
        m = jnp.max(scores, axis=-1, keepdims=True)
        e = jnp.exp(scores - m)
        probs = e / jnp.sum(e, axis=-1, keepdims=True)                  # (1, L)

        # attention-applied context (== torch.bmm) + ctx gate contribution.
        ctx = jnp.dot(probs, enc, preferred_element_type=jnp.float32)   # (1, Hd)
        gates = gates + jnp.dot(ctx.astype(w_ctx_ref.dtype), w_ctx_ref[...],
                                preferred_element_type=jnp.float32)     # (1, 4O)

        # PyTorch LSTM gate order: i, f, g, o.
        i_g = jax.nn.sigmoid(gates[:, 0 * O:1 * O])
        f_g = jax.nn.sigmoid(gates[:, 1 * O:2 * O])
        g_g = jnp.tanh(gates[:, 2 * O:3 * O])
        o_g = jax.nn.sigmoid(gates[:, 3 * O:4 * O])
        c_new = f_g * c0 + i_g * g_g
        h_new = o_g * jnp.tanh(c_new)

        state_ref[0:1, :O] = h_new
        state_ref[1:2, :O] = c_new
        state_ref[2:3, :L] = probs

    # Every vocab tile: logits_tile = h_new @ w_final_tile + b_final_tile.
    h_new = state_ref[0:1, :O]
    logits_ref[...] = (
        jnp.dot(h_new.astype(w_fin_ref.dtype), w_fin_ref[...],
                preferred_element_type=jnp.float32) + b_fin_ref[...])


def prepare_params(params, hidden_size, output_size, vocab_size,
                   mxu_dtype=jnp.bfloat16):
    """One-time parameter re-layout, hoisted out of the per-token forward."""
    O, Hd, V = output_size, hidden_size, vocab_size
    W_in = _round_up(max(V + O, 4 * O, Hd, 128), 128)

    w_ih, w_hh = params["w_ih"], params["w_hh"]        # (4O, Hd+V), (4O, O)

    def padrow(v):
        return jnp.pad(v.astype(jnp.float32), ((0, 0), (0, W_in - v.shape[1])))

    # TODO(synk): if `inputs` is a one-hot token, gather w_ih[:, Hd + token]
    #             via scalar prefetch instead of streaming the V-wide block.
    # TODO(synk): on v7x, quantize w_final to fp8 with per-column scales folded
    #             into b_final.
    prepared = {
        "a_we_row": padrow(params["attn_w"][:, O:]),                    # (1, W_in)
        "b_lstm_row": padrow((params["b_ih"] + params["b_hh"]).reshape(1, 4 * O)),
        # fused gate weights, split so only the ctx part is on the critical path
        "w_xh": jnp.concatenate([w_ih[:, Hd:].T, w_hh.T], axis=0).astype(mxu_dtype),
        "w_ctx": w_ih[:, :Hd].T.astype(mxu_dtype),                      # (Hd, 4O)
        "w_final": params["final_w"].T.astype(mxu_dtype),               # (O, V)
        "b_final": params["final_b"].reshape(1, V).astype(jnp.float32),
    }
    dims = dict(O=O, Hd=Hd, V=V, W_in=W_in, TV=_pick_v_tile(V))
    return prepared, dims


def attention_decoder_forward(decoder_hidden, encoder_outputs, inputs,
                              prepared, dims):
    """Mirrors AttentionDecoder.forward.

    decoder_hidden : (h, c), each (1, 1, O)
    encoder_outputs: (L, 1, Hd)
    inputs         : (1, 1, V)
    Returns (output (1, V), (h_new (1,1,O), c_new (1,1,O)), probs (1, L)).
    """
    O, Hd, V, W_in, TV = (dims[k] for k in ("O", "Hd", "V", "W_in", "TV"))

    h0 = decoder_hidden[0][0]                              # (1, O)
    c0 = decoder_hidden[1][0]                              # (1, O)
    enc = encoder_outputs[:, 0, :].astype(jnp.float32)     # (L, Hd)
    inp = inputs[0]                                        # (1, V)
    L = enc.shape[0]
    # TODO(synk): for long encoder sequences, tile L with an online-softmax
    #             (flash-style) accumulation and stream enc as bf16.

    W_state = _round_up(max(O, L, 128), 128)

    def padrow(v):
        return jnp.pad(v.astype(jnp.float32), ((0, 0), (0, W_in - v.shape[1])))

    # Tiny per-step activation slab -> one lane-aligned VMEM input.
    vec_slab = jnp.concatenate([
        padrow(jnp.concatenate([inp, h0], axis=1)),        # row 0: xh
        padrow(c0),                                        # row 1: c0
        prepared["b_lstm_row"],                            # row 2: b_lstm
        prepared["a_we_row"],                              # row 3: a_we
        jnp.zeros((4, W_in), jnp.float32),                 # rows 4-7: pad
    ], axis=0)

    kernel = functools.partial(attn_decoder_kernel, O=O, Hd=Hd, V=V, L=L)
    n_tiles = V // TV

    logits, state = pl.pallas_call(
        kernel,
        grid=(n_tiles,),
        out_shape=(jax.ShapeDtypeStruct((1, V), jnp.float32),
                   jax.ShapeDtypeStruct((8, W_state), jnp.float32)),
        in_specs=[
            pl.BlockSpec((8, W_in), lambda j: (0, 0)),        # vec slab (resident)
            pl.BlockSpec((L, Hd), lambda j: (0, 0)),          # encoder outputs
            pl.BlockSpec((V + O, 4 * O), lambda j: (0, 0)),   # w_gate_xh
            pl.BlockSpec((Hd, 4 * O), lambda j: (0, 0)),      # w_gate_ctx
            pl.BlockSpec((O, TV), lambda j: (0, j)),          # w_final (V-tiled)
            pl.BlockSpec((1, TV), lambda j: (0, j)),          # b_final (V-tiled)
        ],
        out_specs=(
            pl.BlockSpec((1, TV), lambda j: (0, j)),          # logits (V-tiled)
            pl.BlockSpec((8, W_state), lambda j: (0, 0)),     # state (resident)
        ),
        compiler_params=pltpu.CompilerParams(
            # "arbitrary": the state block is computed at j == 0 and reused by
            # later vocab tiles.
            # TODO(synk): on v7x, split the V axis across both TensorCores
            #             ("parallel") by recomputing the tiny LSTM state per
            #             core or moving it into a separate kernel.
            dimension_semantics=("arbitrary",),
            vmem_limit_bytes=32 * 1024 * 1024,
        ),
    )(vec_slab, enc, prepared["w_xh"], prepared["w_ctx"],
      prepared["w_final"], prepared["b_final"])

    h_new = state[0:1, :O]
    c_new = state[1:2, :O]
    probs = state[2:3, :L]
    return logits, (h_new[None], c_new[None]), probs


def reference_forward(decoder_hidden, encoder_outputs, inputs, params):
    """Pure-JAX reference with PyTorch-identical semantics."""
    h0 = decoder_hidden[0][0]
    c0 = decoder_hidden[1][0]
    enc = encoder_outputs[:, 0, :]
    inp = inputs[0]
    L, Hd = enc.shape
    O = h0.shape[1]

    h_rep = jnp.broadcast_to(h0, (L, O))
    cat = jnp.concatenate([h_rep, enc], axis=1)                    # (L, O+Hd)
    scores = cat @ params["attn_w"].T + params["attn_b"]           # (L, 1)
    probs = jax.nn.softmax(scores[:, 0])[None, :]                  # (1, L)
    ctx = probs @ enc                                              # (1, Hd)
    x = jnp.concatenate([ctx, inp], axis=1)                        # (1, Hd+V)
    gates = (x @ params["w_ih"].T + params["b_ih"]
             + h0 @ params["w_hh"].T + params["b_hh"])
    i = jax.nn.sigmoid(gates[:, :O])
    f = jax.nn.sigmoid(gates[:, O:2 * O])
    g = jnp.tanh(gates[:, 2 * O:3 * O])
    o = jax.nn.sigmoid(gates[:, 3 * O:4 * O])
    c_new = f * c0 + i * g
    h_new = o * jnp.tanh(c_new)
    out = h_new @ params["final_w"].T + params["final_b"]
    return out, (h_new[None], c_new[None]), probs


def init_params(key, hidden_size, output_size, vocab_size):
    """Deterministic PyTorch-style (uniform) init for all module parameters."""
    ks = jax.random.split(key, 8)
    O, Hd, V = output_size, hidden_size, vocab_size

    k_attn = 1.0 / np.sqrt(Hd + O)
    k_lstm = 1.0 / np.sqrt(O)
    k_fin = 1.0 / np.sqrt(O)
    u = lambda k, shape, s: jax.random.uniform(k, shape, jnp.float32, -s, s)

    return {
        "attn_w": u(ks[0], (1, O + Hd), k_attn),
        "attn_b": u(ks[1], (1,), k_attn),
        "w_ih":   u(ks[2], (4 * O, Hd + V), k_lstm),
        "w_hh":   u(ks[3], (4 * O, O), k_lstm),
        "b_ih":   u(ks[4], (4 * O,), k_lstm),
        "b_hh":   u(ks[5], (4 * O,), k_lstm),
        "final_w": u(ks[6], (V, O), k_fin),
        "final_b": u(ks[7], (V,), k_fin),
    }


if __name__ == "__main__":
    hidden_size, output_size, vocab_size, seq_len = 32, 32, 32, 8

    key = jax.random.PRNGKey(0)
    k_h, k_c, k_enc, k_in, k_par = jax.random.split(key, 5)

    decoder_hidden = (
        jax.random.normal(k_h, (1, 1, output_size), jnp.float32),
        jax.random.normal(k_c, (1, 1, output_size), jnp.float32),
    )
    encoder_outputs = jax.random.normal(k_enc, (seq_len, 1, hidden_size), jnp.float32)
    inputs = jax.random.normal(k_in, (1, 1, vocab_size), jnp.float32)
    params = init_params(k_par, hidden_size, output_size, vocab_size)

    # One-time weight re-layout / bf16 cast (hoisted out of the decode step).
    prepared, dims = prepare_params(params, hidden_size, output_size, vocab_size,
                                    mxu_dtype=jnp.bfloat16)

    out, (h_new, c_new), probs = attention_decoder_forward(
        decoder_hidden, encoder_outputs, inputs, prepared, dims)
    jax.block_until_ready((out, h_new, c_new, probs))

    ref_out, (ref_h, ref_c), ref_probs = reference_forward(
        decoder_hidden, encoder_outputs, inputs, params)

    # Weights are deliberately streamed as bf16 -> tolerances reflect that.
    np.testing.assert_allclose(np.asarray(out), np.asarray(ref_out), rtol=2e-2, atol=1e-2)
    np.testing.assert_allclose(np.asarray(h_new), np.asarray(ref_h), rtol=2e-2, atol=1e-2)
    np.testing.assert_allclose(np.asarray(c_new), np.asarray(ref_c), rtol=2e-2, atol=1e-2)
    np.testing.assert_allclose(np.asarray(probs), np.asarray(ref_probs), rtol=2e-2, atol=1e-3)

    assert out.shape == (1, vocab_size)
    assert h_new.shape == (1, 1, output_size) and c_new.shape == (1, 1, output_size)
    assert probs.shape == (1, seq_len)
    print("KERNEL_OK")
</pallas_src>

<mosaic_0001>
module attributes {stable_mosaic.version = 11 : i64} {
  func.func @attn_decoder_kernel(%arg0: i32, %arg1: memref<8x128xf32, #tpu.memory_space<vmem>>, %arg2: memref<8x32xf32, #tpu.memory_space<vmem>>, %arg3: memref<64x128xbf16, #tpu.memory_space<vmem>>, %arg4: memref<32x128xbf16, #tpu.memory_space<vmem>>, %arg5: memref<32x32xbf16, #tpu.memory_space<vmem>>, %arg6: memref<1x32xf32, #tpu.memory_space<vmem>>, %arg7: memref<1x32xf32, #tpu.memory_space<vmem>>, %arg8: memref<8x128xf32, #tpu.memory_space<vmem>>) attributes {dimension_semantics = [#tpu.dimension_semantics<arbitrary>], iteration_bounds = array<i64: 1>, scalar_prefetch = 0 : i64, scratch_operands = 0 : i64, tpu.core_type = #tpu.core_type<tc>, window_params = [{pipeline_mode = #tpu.pipeline_mode<synchronous>, transform_indices = @transform_0, window_bounds = array<i64: 8, 128>}, {pipeline_mode = #tpu.pipeline_mode<synchronous>, transform_indices = @transform_1, window_bounds = array<i64: 8, 32>}, {pipeline_mode = #tpu.pipeline_mode<synchronous>, transform_indices = @transform_2, window_bounds = array<i64: 64, 128>}, {pipeline_mode = #tpu.pipeline_mode<synchronous>, transform_indices = @transform_3, window_bounds = array<i64: 32, 128>}, {transform_indices = @transform_4, window_bounds = array<i64: 32, 32>}, {transform_indices = @transform_5, window_bounds = array<i64: 1, 32>}, {transform_indices = @transform_6, window_bounds = array<i64: 1, 32>}, {pipeline_mode = #tpu.pipeline_mode<synchronous>, transform_indices = @transform_7, window_bounds = array<i64: 8, 128>}]} {
    %c0_i32 = arith.constant 0 : i32
    %0 = arith.cmpi eq, %arg0, %c0_i32 : i32
    %1 = arith.extui %0 : i1 to i32
    %c0_i32_0 = arith.constant 0 : i32
    %2 = arith.cmpi ne, %1, %c0_i32_0 : i32
    scf.if %2 {
      %cst_8 = arith.constant 0.000000e+00 : f32
      %10 = vector.broadcast %cst_8 : f32 to vector<8x128xf32>
      %c0_9 = arith.constant 0 : index
      %c0_10 = arith.constant 0 : index
      %11 = vector.load %arg8[%c0_9, %c0_10] : memref<8x128xf32, #tpu.memory_space<vmem>>, vector<8x128xf32>
      tpu.vector_store %arg8[%c0_9, %c0_10], %10 {strides = array<i32>} : memref<8x128xf32, #tpu.memory_space<vmem>>, vector<8x128xf32>,
      %c0_11 = arith.constant 0 : index
      %c0_12 = arith.constant 0 : index
      %12 = vector.load %arg1[%c0_11, %c0_12] : memref<8x128xf32, #tpu.memory_space<vmem>>, vector<1x64xf32>
      %c1 = arith.constant 1 : index
      %c0_13 = arith.constant 0 : index
      %13 = vector.load %arg1[%c1, %c0_13] : memref<8x128xf32, #tpu.memory_space<vmem>>, vector<1x32xf32>
      %c2 = arith.constant 2 : index
      %c0_14 = arith.constant 0 : index
      %14 = vector.load %arg1[%c2, %c0_14] : memref<8x128xf32, #tpu.memory_space<vmem>>, vector<1x128xf32>
      %c3 = arith.constant 3 : index
      %c0_15 = arith.constant 0 : index
      %15 = vector.load %arg1[%c3, %c0_15] : memref<8x128xf32, #tpu.memory_space<vmem>>, vector<1x32xf32>
      %16 = arith.truncf %12 : vector<1x64xf32> to vector<1x64xbf16>
      %c0_16 = arith.constant 0 : index
      %c0_17 = arith.constant 0 : index
      %17 = vector.load %arg3[%c0_16, %c0_17] : memref<64x128xbf16, #tpu.memory_space<vmem>>, vector<64x128xbf16>
      %cst_18 = arith.constant dense<0.000000e+00> : vector<1x128xf32>
      %18 = tpu.matmul %16, %17, %cst_18 {dimension_numbers = #tpu.dot_dimension_numbers<[1], [0], [0], [1], [0, 0, 1, 1], [], []>} : vector<1x64xbf16>, vector<64x128xbf16>, vector<1x128xf32> -> vector<1x128xf32>
      %19 = arith.addf %18, %14 : vector<1x128xf32>
      %c0_19 = arith.constant 0 : index
      %c0_20 = arith.constant 0 : index
      %20 = vector.load %arg2[%c0_19, %c0_20] : memref<8x32xf32, #tpu.memory_space<vmem>>, vector<8x32xf32>
      %cst_21 = arith.constant dense<0.000000e+00> : vector<1x8xf32>
      %21 = tpu.matmul %15, %20, %cst_21 {dimension_numbers = #tpu.dot_dimension_numbers<[1], [1], [0], [0], [0, 0, 1, 0], [], []>} : vector<1x32xf32>, vector<8x32xf32>, vector<1x8xf32> -> vector<1x8xf32>
      %cst_22 = arith.constant dense<0xFF800000> : vector<1xf32>
      %22 = vector.multi_reduction <maximumf>, %21, %cst_22 [1] : vector<1x8xf32> to vector<1xf32>
      %23 = vector.shape_cast %22 : vector<1xf32> to vector<1x1xf32>
      %24 = vector.broadcast %23 : vector<1x1xf32> to vector<1x8xf32>
      %25 = arith.subf %21, %24 : vector<1x8xf32>
      %26 = math.exp %25 : vector<1x8xf32>
      %cst_23 = arith.constant dense<0.000000e+00> : vector<1xf32>
      %27 = vector.multi_reduction <add>, %26, %cst_23 [1] : vector<1x8xf32> to vector<1xf32>
      %28 = vector.shape_cast %27 : vector<1xf32> to vector<1x1xf32>
      %29 = vector.broadcast %28 : vector<1x1xf32> to vector<1x8xf32>
      %30 = arith.divf %26, %29 : vector<1x8xf32>
      %cst_24 = arith.constant dense<0.000000e+00> : vector<1x32xf32>
      %31 = tpu.matmul %30, %20, %cst_24 {dimension_numbers = #tpu.dot_dimension_numbers<[1], [0], [0], [1], [0, 0, 1, 1], [], []>} : vector<1x8xf32>, vector<8x32xf32>, vector<1x32xf32> -> vector<1x32xf32>
      %32 = arith.truncf %31 : vector<1x32xf32> to vector<1x32xbf16>
      %c0_25 = arith.constant 0 : index
      %c0_26 = arith.constant 0 : index
      %33 = vector.load %arg4[%c0_25, %c0_26] : memref<32x128xbf16, #tpu.memory_space<vmem>>, vector<32x128xbf16>
      %cst_27 = arith.constant dense<0.000000e+00> : vector<1x128xf32>
      %34 = tpu.matmul %32, %33, %cst_27 {dimension_numbers = #tpu.dot_dimension_numbers<[1], [0], [0], [1], [0, 0, 1, 1], [], []>} : vector<1x32xbf16>, vector<32x128xbf16>, vector<1x128xf32> -> vector<1x128xf32>
      %35 = arith.addf %19, %34 : vector<1x128xf32>
      %36 = vector.extract_strided_slice %35 {offsets = [0, 0], sizes = [1, 32], strides = [1, 1]} : vector<1x128xf32> to vector<1x32xf32>
      %37 = arith.negf %36 : vector<1x32xf32>
      %38 = math.exp %37 : vector<1x32xf32>
      %cst_28 = arith.constant 1.000000e+00 : f32
      %39 = vector.broadcast %cst_28 : f32 to vector<1x32xf32>
      %40 = arith.addf %39, %38 : vector<1x32xf32>
      %41 = arith.divf %39, %40 : vector<1x32xf32>
      %42 = vector.extract_strided_slice %35 {offsets = [0, 32], sizes = [1, 32], strides = [1, 1]} : vector<1x128xf32> to vector<1x32xf32>
      %43 = arith.negf %42 : vector<1x32xf32>
      %44 = math.exp %43 : vector<1x32xf32>
      %cst_29 = arith.constant 1.000000e+00 : f32
      %45 = vector.broadcast %cst_29 : f32 to vector<1x32xf32>
      %46 = arith.addf %45, %44 : vector<1x32xf32>
      %47 = arith.divf %45, %46 : vector<1x32xf32>
      %48 = vector.extract_strided_slice %35 {offsets = [0, 64], sizes = [1, 32], strides = [1, 1]} : vector<1x128xf32> to vector<1x32xf32>
      %49 = math.tanh %48 : vector<1x32xf32>
      %50 = vector.extract_strided_slice %35 {offsets = [0, 96], sizes = [1, 32], strides = [1, 1]} : vector<1x128xf32> to vector<1x32xf32>
      %51 = arith.negf %50 : vector<1x32xf32>
      %52 = math.exp %51 : vector<1x32xf32>
      %cst_30 = arith.constant 1.000000e+00 : f32
      %53 = vector.broadcast %cst_30 : f32 to vector<1x32xf32>
      %54 = arith.addf %53, %52 : vector<1x32xf32>
      %55 = arith.divf %53, %54 : vector<1x32xf32>
      %56 = arith.mulf %47, %13 : vector<1x32xf32>
      %57 = arith.mulf %41, %49 : vector<1x32xf32>
      %58 = arith.addf %56, %57 : vector<1x32xf32>
      %59 = math.tanh %58 : vector<1x32xf32>
      %60 = arith.mulf %55, %59 : vector<1x32xf32>
      %c0_31 = arith.constant 0 : index
      %c0_32 = arith.constant 0 : index
      %61 = vector.load %arg8[%c0_31, %c0_32] : memref<8x128xf32, #tpu.memory_space<vmem>>, vector<1x32xf32>
      tpu.vector_store %arg8[%c0_31, %c0_32], %60 {strides = array<i32>} : memref<8x128xf32, #tpu.memory_space<vmem>>, vector<1x32xf32>,
      %c1_33 = arith.constant 1 : index
      %c0_34 = arith.constant 0 : index
      %62 = vector.load %arg8[%c1_33, %c0_34] : memref<8x128xf32, #tpu.memory_space<vmem>>, vector<1x32xf32>
      tpu.vector_store %arg8[%c1_33, %c0_34], %58 {strides = array<i32>} : memref<8x128xf32, #tpu.memory_space<vmem>>, vector<1x32xf32>,
      %c2_35 = arith.constant 2 : index
      %c0_36 = arith.constant 0 : index
      %63 = vector.load %arg8[%c2_35, %c0_36] : memref<8x128xf32, #tpu.memory_space<vmem>>, vector<1x8xf32>
      tpu.vector_store %arg8[%c2_35, %c0_36], %30 {strides = array<i32>} : memref<8x128xf32, #tpu.memory_space<vmem>>, vector<1x8xf32>,
    } else {
    }
    %c0 = arith.constant 0 : index
    %c0_1 = arith.constant 0 : index
    %3 = vector.load %arg8[%c0, %c0_1] : memref<8x128xf32, #tpu.memory_space<vmem>>, vector<1x32xf32>
    %4 = arith.truncf %3 : vector<1x32xf32> to vector<1x32xbf16>
    %c0_2 = arith.constant 0 : index
    %c0_3 = arith.constant 0 : index
    %5 = vector.load %arg5[%c0_2, %c0_3] : memref<32x32xbf16, #tpu.memory_space<vmem>>, vector<32x32xbf16>
    %cst = arith.constant dense<0.000000e+00> : vector<1x32xf32>
    %6 = tpu.matmul %4, %5, %cst {dimension_numbers = #tpu.dot_dimension_numbers<[1], [0], [0], [1], [0, 0, 1, 1], [], []>} : vector<1x32xbf16>, vector<32x32xbf16>, vector<1x32xf32> -> vector<1x32xf32>
    %c0_4 = arith.constant 0 : index
    %c0_5 = arith.constant 0 : index
    %7 = vector.load %arg6[%c0_4, %c0_5] : memref<1x32xf32, #tpu.memory_space<vmem>>, vector<1x32xf32>
    %8 = arith.addf %6, %7 : vector<1x32xf32>
    %c0_6 = arith.constant 0 : index
    %c0_7 = arith.constant 0 : index
    %9 = vector.load %arg7[%c0_6, %c0_7] : memref<1x32xf32, #tpu.memory_space<vmem>>, vector<1x32xf32>
    tpu.vector_store %arg7[%c0_6, %c0_7], %8 {strides = array<i32>} : memref<1x32xf32, #tpu.memory_space<vmem>>, vector<1x32xf32>,
    return
  }
  func.func @transform_0(%arg0: i32) -> (i32, i32) {
    %c0_i32 = arith.constant 0 : i32
    %c0_i32_0 = arith.constant 0 : i32
    %c0_i32_1 = arith.constant 0 : i32
    return %c0_i32, %c0_i32_0 : i32, i32
  }
  func.func @transform_1(%arg0: i32) -> (i32, i32) {
    %c0_i32 = arith.constant 0 : i32
    %c0_i32_0 = arith.constant 0 : i32
    %c0_i32_1 = arith.constant 0 : i32
    return %c0_i32, %c0_i32_0 : i32, i32
  }
  func.func @transform_2(%arg0: i32) -> (i32, i32) {
    %c0_i32 = arith.constant 0 : i32
    %c0_i32_0 = arith.constant 0 : i32
    %c0_i32_1 = arith.constant 0 : i32
    return %c0_i32, %c0_i32_0 : i32, i32
  }
  func.func @transform_3(%arg0: i32) -> (i32, i32) {
    %c0_i32 = arith.constant 0 : i32
    %c0_i32_0 = arith.constant 0 : i32
    %c0_i32_1 = arith.constant 0 : i32
    return %c0_i32, %c0_i32_0 : i32, i32
  }
  func.func @transform_4(%arg0: i32) -> (i32, i32) {
    %c0_i32 = arith.constant 0 : i32
    %c0_i32_0 = arith.constant 0 : i32
    return %c0_i32, %arg0 : i32, i32
  }
  func.func @transform_5(%arg0: i32) -> (i32, i32) {
    %c0_i32 = arith.constant 0 : i32
    %c0_i32_0 = arith.constant 0 : i32
    return %c0_i32, %arg0 : i32, i32
  }
  func.func @transform_6(%arg0: i32) -> (i32, i32) {
    %c0_i32 = arith.constant 0 : i32
    %c0_i32_0 = arith.constant 0 : i32
    return %c0_i32, %arg0 : i32, i32
  }
  func.func @transform_7(%arg0: i32) -> (i32, i32) {
    %c0_i32 = arith.constant 0 : i32
    %c0_i32_0 = arith.constant 0 : i32
    %c0_i32_1 = arith.constant 0 : i32
    return %c0_i32, %c0_i32_0 : i32, i32
  }
}

</mosaic_0001>

<llo_original>
// kernel: tpu_custom_call.1
$region0: #{tpu_custom_call.1}
  #allocation0 [shape = 'u32[]', space=smem, size = 0x4, offset = 0x4, fixed_abs, tag = 'smem constant byte address 0x4 - core index']
  #allocation1 [shape = 'u32[144,128]{1,0:T(1,128)}', space=vmem, size = 0x12000, scoped, tag = 'internal scratch']
  %s0 = inlined_call_operand.hbm [shape: f32[8,128], index: 0, kind: input, shape index: {}]
  %s1 = inlined_call_operand.hbm [shape: f32[8,32], index: 1, kind: input, shape index: {}]
  %s2 = inlined_call_operand.hbm [shape: bf16[64,128], index: 2, kind: input, shape index: {}]
  %s3 = inlined_call_operand.hbm [shape: bf16[32,128], index: 3, kind: input, shape index: {}]
  %s4 = inlined_call_operand.hbm [shape: bf16[32,32], index: 4, kind: input, shape index: {}]
  %s5 = inlined_call_operand.vmem [shape: f32[1,32], index: 5, kind: input, shape index: {}]
  %s6 = inlined_call_operand.hbm [shape: f32[1,32], index: 6, kind: output, shape index: {0}]
  %s7 = inlined_call_operand.hbm [shape: f32[8,128], index: 7, kind: output, shape index: {1}]
  %8 = xla_tuple %s6, %s7
  %s9 = sld [smem:[#allocation0]]
  $region66: #{tpu_custom_call.1} parent=0
    _
  %s11 = ssub.s32 1, %s9
  %s12 = scalar_select 0, %s11, %s9
  $region1: #{tpu_custom_call.1} parent=0
    #allocation2 [shape = 'u8[4096]{0}', space=vmem, size = 0x1000, scoped, tag = 'input window, operand 0, single buffered']
    #allocation3 [shape = 's32[1]{0}', space=sflag, size = 0x4, scoped, tag = 'scoped memory for tpu_custom_call.1']
    #allocation4 [shape = 's32[1]{0}', space=sflag, size = 0x4, scoped, tag = 'scoped memory for tpu_custom_call.1']
    #allocation5 [shape = 'u8[4096]{0}', space=vmem, size = 0x1000, scoped, tag = 'input window, operand 1, single buffered']
    #allocation6 [shape = 's32[1]{0}', space=sflag, size = 0x4, scoped, tag = 'scoped memory for tpu_custom_call.1']
    #allocation7 [shape = 'u8[16384]{0}', space=vmem, size = 0x4000, scoped, tag = 'input window, operand 2, single buffered']
    #allocation8 [shape = 'u8[8192]{0}', space=vmem, size = 0x2000, scoped, tag = 'input window, operand 3, single buffered']
    #allocation9 [shape = 's32[1]{0}', space=sflag, size = 0x4, scoped, tag = 'scoped memory for tpu_custom_call.1']
    #allocation10 [shape = 'u8[8192]{0}', space=vmem, size = 0x2000, scoped, tag = 'input window, operand 4, single buffered']
    #allocation11 [shape = 'u8[512]{0}', space=vmem, size = 0x400, scoped, tag = 'output window, operand 0, single buffered']
    #allocation12 [shape = 'u8[4096]{0}', space=vmem, size = 0x1000, scoped, tag = 'output window, operand 1, single buffered']
    #allocation13 [shape = 's32[1]{0}', space=sflag, size = 0x4, scoped, tag = 'scoped memory for tpu_custom_call.1']
    %13 = vsyncpa [#allocation3], 0
    %14 = vsyncpa [#allocation6], 0
    %15 = vsyncpa [#allocation9], 0
    %16 = vsyncpa [#allocation4], 0
    %17 = vsyncpa [#allocation13], 0
    // Predicated region
    $region2: #{tpu_custom_call.1} parent=1 // pred_check
      _
    $region3: #{tpu_custom_call.1} parent=1 // pred_check_branch
      %19 = sbr.rel (0) target = $region5
    $region4: #{tpu_custom_call.1} parent=1 // pred_region
      %s21 = ssub.s32 128, 128
      %22 = vsyncadd [#allocation3], %s21
      %s24 = sshll.u32 [#allocation2], 4
      %s25 = int_to_ptr.vmem [resolvable:$true] %s24
      %27 = dma.hbm_to_vmem [thread:$0]  %s0, 128, %s25, [#allocation3]
    $region5: #{tpu_custom_call.1} parent=1 // pred_fallthru
      _
    // Predicated region
    $region6: #{tpu_custom_call.1} parent=1 // pred_check
      _
    $region7: #{tpu_custom_call.1} parent=1 // pred_check_branch
      %29 = sbr.rel (0) target = $region9
    $region8: #{tpu_custom_call.1} parent=1 // pred_region
      %s31 = ssub.s32 128, 128
      %32 = vsyncadd [#allocation6], %s31
      %s34 = sshll.u32 [#allocation5], 4
      %s35 = int_to_ptr.vmem [resolvable:$true] %s34
      %37 = dma.hbm_to_vmem [thread:$0]  %s1, 128, %s35, [#allocation6]
    $region9: #{tpu_custom_call.1} parent=1 // pred_fallthru
      _
    // Predicated region
    $region10: #{tpu_custom_call.1} parent=1 // pred_check
      _
    $region11: #{tpu_custom_call.1} parent=1 // pred_check_branch
      %39 = sbr.rel (0) target = $region13
    $region12: #{tpu_custom_call.1} parent=1 // pred_region
      %s41 = ssub.s32 512, 512
      %42 = vsyncadd [#allocation6], %s41
      %s43 = sshll.u32 [#allocation7], 4
      %s44 = int_to_ptr.vmem [resolvable:$true] %s43
      %49 = dma.hbm_to_vmem [thread:$0]  %s2, 512, %s44, [#allocation6], 64, 64, 4
    $region13: #{tpu_custom_call.1} parent=1 // pred_fallthru
      _
    // Predicated region
    $region14: #{tpu_custom_call.1} parent=1 // pred_check
      _
    $region15: #{tpu_custom_call.1} parent=1 // pred_check_branch
      %51 = sbr.rel (0) target = $region17
    $region16: #{tpu_custom_call.1} parent=1 // pred_region
      %s53 = ssub.s32 256, 256
      %54 = vsyncadd [#allocation9], %s53
      %s55 = sshll.u32 [#allocation8], 4
      %s56 = int_to_ptr.vmem [resolvable:$true] %s55
      %61 = dma.hbm_to_vmem [thread:$0]  %s3, 256, %s56, [#allocation9], 64, 64, 4
    $region17: #{tpu_custom_call.1} parent=1 // pred_fallthru
      _
    // Predicated region
    $region18: #{tpu_custom_call.1} parent=1 // pred_check
      _
    $region19: #{tpu_custom_call.1} parent=1 // pred_check_branch
      %63 = sbr.rel (0) target = $region21
    $region20: #{tpu_custom_call.1} parent=1 // pred_region
      %s65 = ssub.s32 256, 256
      %66 = vsyncadd [#allocation9], %s65
      %s67 = sshll.u32 [#allocation10], 4
      %s68 = int_to_ptr.vmem [resolvable:$true] %s67
      %73 = dma.hbm_to_vmem [thread:$0]  %s4, 256, %s68, [#allocation9], 64, 64, 4
    $region21: #{tpu_custom_call.1} parent=1 // pred_fallthru
      _
    // Predicated region
    $region22: #{tpu_custom_call.1} parent=1 // pred_check
      _
    $region23: #{tpu_custom_call.1} parent=1 // pred_check_branch
      %75 = sbr.rel (0) target = $region25
    $region24: #{tpu_custom_call.1} parent=1 // pred_region
      _
    $region25: #{tpu_custom_call.1} parent=1 // pred_fallthru
      _
    // Predicated region
    $region26: #{tpu_custom_call.1} parent=1 // pred_check
      _
    $region27: #{tpu_custom_call.1} parent=1 // pred_check_branch
      %77 = sbr.rel (0) target = $region29
    $region28: #{tpu_custom_call.1} parent=1 // pred_region
      %78 = dma.done [#allocation3], 128
    $region29: #{tpu_custom_call.1} parent=1 // pred_fallthru
      _
    // Predicated region
    $region30: #{tpu_custom_call.1} parent=1 // pred_check
      _
    $region31: #{tpu_custom_call.1} parent=1 // pred_check_branch
      %80 = sbr.rel (0) target = $region33
    $region32: #{tpu_custom_call.1} parent=1 // pred_region
      %81 = dma.done [#allocation6], 128
    $region33: #{tpu_custom_call.1} parent=1 // pred_fallthru
      _
    // Predicated region
    $region34: #{tpu_custom_call.1} parent=1 // pred_check
      _
    $region35: #{tpu_custom_call.1} parent=1 // pred_check_branch
      %83 = sbr.rel (0) target = $region37
    $region36: #{tpu_custom_call.1} parent=1 // pred_region
      %84 = dma.done [#allocation6], 512
    $region37: #{tpu_custom_call.1} parent=1 // pred_fallthru
      _
    // Predicated region
    $region38: #{tpu_custom_call.1} parent=1 // pred_check
      _
    $region39: #{tpu_custom_call.1} parent=1 // pred_check_branch
      %86 = sbr.rel (0) target = $region41
    $region40: #{tpu_custom_call.1} parent=1 // pred_region
      %87 = dma.done [#allocation9], 256
    $region41: #{tpu_custom_call.1} parent=1 // pred_fallthru
      _
    // Predicated region
    $region42: #{tpu_custom_call.1} parent=1 // pred_check
      _
    $region43: #{tpu_custom_call.1} parent=1 // pred_check_branch
      %89 = sbr.rel (0) target = $region45
    $region44: #{tpu_custom_call.1} parent=1 // pred_region
      %90 = dma.done [#allocation9], 256
    $region45: #{tpu_custom_call.1} parent=1 // pred_fallthru
      _
    %p92 = scmp.eq.s32.totalorder 0, 0
    // Predicated region
    $region46: #{tpu_custom_call.1} parent=1 // pred_check
      %p93 = pneg %p92
    $region47: #{tpu_custom_call.1} parent=1 // pred_check_branch
      %95 = sbr.rel (%p93) target = $region49
    $region48: #{tpu_custom_call.1} parent=1 // pred_region
      %96 = vst [vmem:[#allocation12] sm:$0xff] 0.0
      %v97 = vld [vmem:[#allocation2] sm:$0x1]
      %v98 = vld [vmem:[#allocation2 + $0x1] sm:$0x1]
      %v99 = vld [vmem:[#allocation2 + $0x2] sm:$0x1]
      %v100 = vld [vmem:[#allocation2 + $0x3] sm:$0x1]
      %v101 = vpack.c.bf16 %v97, %v97
      %v102 = vld [vmem:[#allocation7] sm:$0xf]
      %v103 = vld [vmem:[#allocation7 + $0x4] sm:$0xf]
      %v104 = vld [vmem:[#allocation7 + $0x8] sm:$0xf]
      %v105 = vld [vmem:[#allocation7 + $0xc] sm:$0xf]
      %v106 = vld [vmem:[#allocation7 + $0x10] sm:$0xf]
      %v107 = vld [vmem:[#allocation7 + $0x14] sm:$0xf]
      %v108 = vld [vmem:[#allocation7 + $0x18] sm:$0xf]
      %v109 = vld [vmem:[#allocation7 + $0x1c] sm:$0xf]
      %v118 = vunpack.c.l.b16 %v102
      %v119 = vunpack.c.l.b16 %v103
      %v120 = vunpack.c.l.b16 %v104
      %v121 = vunpack.c.l.b16 %v105
      %v122 = vunpack.c.l.b16 %v106
      %v123 = vunpack.c.l.b16 %v107
      %v124 = vunpack.c.l.b16 %v108
      %v125 = vunpack.c.l.b16 %v109
      %v126 = vpack.c.b16 %v119, %v118
      %v127 = vpack.c.b16 %v121, %v120
      %v128 = vpack.c.b16 %v123, %v122
      %v129 = vpack.c.b16 %v125, %v124
      %vm134 = vcmask 523264
      %v136 = vsel %vm134, %v101, 0
      %138 = vmatprep.subr.bf16.mxu0 0
      %139 = vmatpush1.bf16.msra.mxu0 0
      %140 = vmatprep.subr.bf16.mxu0 0
      %141 = vmatpush1.bf16.msra.mxu0 0
      %142 = vmatprep.subr.bf16.mxu0 0
      %143 = vmatpush1.bf16.msra.mxu0 0
      %144 = vmatprep.subr.bf16.mxu0 0
      %145 = vmatpush1.bf16.msra.mxu0 0
      %146 = vmatprep.subr.bf16.mxu0 0
      %147 = vmatpush1.bf16.msra.mxu0 %v129
      %148 = vmatprep.subr.bf16.mxu0 0
      %149 = vmatpush1.bf16.msra.mxu0 %v128
      %150 = vmatprep.subr.bf16.mxu0 0
      %151 = vmatpush1.bf16.msra.mxu0 %v127
      %152 = vmatprep.subr.bf16.mxu0 0
      %153 = vmatpush1.bf16.msra.mxu0 %v126
      %154 = vmatprep.subr.bf16.mxu0 0
      %155 = vmatpush2.bf16.msra.mxu0 0
      %156 = vmatprep.subr.bf16.mxu0 0
      %157 = vmatpush2.bf16.msra.mxu0 0
      %158 = vmatprep.subr.bf16.mxu0 0
      %159 = vmatpush2.bf16.msra.mxu0 0
      %160 = vmatprep.subr.bf16.mxu0 0
      %161 = vmatpush2.bf16.msra.mxu0 0
      %162 = vmatprep.subr.bf16.mxu0 0
      %163 = vmatpush2.bf16.msra.mxu0 0
      %164 = vmatprep.subr.bf16.mxu0 0
      %165 = vmatpush2.bf16.msra.mxu0 0
      %166 = vmatprep.subr.bf16.mxu0 0
      %167 = vmatpush2.bf16.msra.mxu0 0
      %168 = vmatprep.subr.bf16.mxu0 0
      %169 = vmatpush2.bf16.msra.mxu0 0
      %170 = vmatprep.mubr.bf16.mxu0 0
      %171 = vmatmul.mubr.bf16.gmra.mxu0 %v136
      %v172 = vpop.f32.mrf.mxu0
      %v173 = vadd.f32 %v99, %v172
      %v174 = vpop.f32.mrf.mxu0
      %v175 = vpop.f32.mrf.mxu0
      %v176 = vpop.f32.mrf.mxu0
      %177 = vdwg.mxu0
      %v178 = vld [vmem:[#allocation5] sm:$0xff]
      %vm179 = vcmask 261120
      %v181 = vsel %vm179, %v100, 0
      %v184 = vsel %vm179, %v178, 0
      %186 = vmatprep.subr.mxu0 0.0
      %187 = vmatpush1.xpose.msra.mxu0 0.0
      %188 = vmatprep.subr.mxu0 0.0
      %189 = vmatpush1.xpose.msra.mxu0 0.0
      %190 = vmatprep.subr.mxu0 0.0
      %191 = vmatpush1.xpose.msra.mxu0 0.0
      %192 = vmatprep.subr.mxu0 0.0
      %193 = vmatpush1.xpose.msra.mxu0 0.0
      %194 = vmatprep.subr.mxu0 0.0
      %195 = vmatpush1.xpose.msra.mxu0 0.0
      %196 = vmatprep.subr.mxu0 0.0
      %197 = vmatpush1.xpose.msra.mxu0 0.0
      %198 = vmatprep.subr.mxu0 0.0
      %199 = vmatpush1.xpose.msra.mxu0 0.0
      %200 = vmatprep.subr.mxu0 0.0
      %201 = vmatpush1.xpose.msra.mxu0 0.0
      %202 = vmatprep.subr.mxu0 0.0
      %203 = vmatpush1.xpose.msra.mxu0 0.0
      %204 = vmatprep.subr.mxu0 0.0
      %205 = vmatpush1.xpose.msra.mxu0 0.0
      %206 = vmatprep.subr.mxu0 0.0
      %207 = vmatpush1.xpose.msra.mxu0 0.0
      %208 = vmatprep.subr.mxu0 0.0
      %209 = vmatpush1.xpose.msra.mxu0 0.0
      %210 = vmatprep.subr.mxu0 0.0
      %211 = vmatpush1.xpose.msra.mxu0 0.0
      %212 = vmatprep.subr.mxu0 0.0
      %213 = vmatpush1.xpose.msra.mxu0 0.0
      %214 = vmatprep.subr.mxu0 0.0
      %215 = vmatpush1.xpose.msra.mxu0 0.0
      %216 = vmatprep.subr.mxu0 0.0
      %217 = vmatpush1.xpose.msra.mxu0 %v184
      %218 = vmatprep.subr.mxu0 0.0
      %219 = vmatpush2.xpose.msra.mxu0 0.0
      %220 = vmatprep.subr.mxu0 0.0
      %221 = vmatpush2.xpose.msra.mxu0 0.0
      %222 = vmatprep.subr.mxu0 0.0
      %223 = vmatpush2.xpose.msra.mxu0 0.0
      %224 = vmatprep.subr.mxu0 0.0
      %225 = vmatpush2.xpose.msra.mxu0 0.0
      %226 = vmatprep.subr.mxu0 0.0
      %227 = vmatpush2.xpose.msra.mxu0 0.0
      %228 = vmatprep.subr.mxu0 0.0
      %229 = vmatpush2.xpose.msra.mxu0 0.0
      %230 = vmatprep.subr.mxu0 0.0
      %231 = vmatpush2.xpose.msra.mxu0 0.0
      %232 = vmatprep.subr.mxu0 0.0
      %233 = vmatpush2.xpose.msra.mxu0 0.0
      %234 = vmatprep.subr.mxu0 0.0
      %235 = vmatpush2.xpose.msra.mxu0 0.0
      %236 = vmatprep.subr.mxu0 0.0
      %237 = vmatpush2.xpose.msra.mxu0 0.0
      %238 = vmatprep.subr.mxu0 0.0
      %239 = vmatpush2.xpose.msra.mxu0 0.0
      %240 = vmatprep.subr.mxu0 0.0
      %241 = vmatpush2.xpose.msra.mxu0 0.0
      %242 = vmatprep.subr.mxu0 0.0
      %243 = vmatpush2.xpose.msra.mxu0 0.0
      %244 = vmatprep.subr.mxu0 0.0
      %245 = vmatpush2.xpose.msra.mxu0 0.0
      %246 = vmatprep.subr.mxu0 0.0
      %247 = vmatpush2.xpose.msra.mxu0 0.0
      %248 = vmatprep.subr.mxu0 0.0
      %249 = vmatpush2.xpose.msra.mxu0 0.0
      %250 = vmatprep.mubr.f32.mxu0 0.0
      %251 = vmatmul.mubr.f32.gmra.mxu0 %v181
      %v252 = vpop.f32.mrf.mxu0
      %v253 = vadd.f32 0.0, %v252
      %v254 = vpop.f32.mrf.mxu0
      %255 = vdwg.mxu0
      %vm256 = vcmask 57344
      %v257 = vsel %vm256, %v253, -inf
      %258 = vmax.xlane.f32.xlu0 %v257
      %v259 = vpop.xlane.xlu0 %258
      %v260 = vsub.f32 %v253, %v259
      %v261 = vmul.f32 %v260, 1.442695
      %v262 = vpow.pop %v261
      %v263 = vsel %vm256, %v262, 0.0
      %264 = vadd.xlane.f32.xlu0 %v263
      %v265 = vpop.xlane.xlu0 %264
      %v266 = vrcp.pop %v265
      %v267 = vmul.f32 %v262, %v266
      %vm268 = vcmask 64512
      %v270 = vsel %vm268, %v267, 0
      %272 = vmatprep.subr.mxu0 0.0
      %273 = vmatpush1.msra.mxu0 0.0
      %274 = vmatprep.subr.mxu0 0.0
      %275 = vmatpush1.msra.mxu0 0.0
      %276 = vmatprep.subr.mxu0 0.0
      %277 = vmatpush1.msra.mxu0 0.0
      %278 = vmatprep.subr.mxu0 0.0
      %279 = vmatpush1.msra.mxu0 0.0
      %280 = vmatprep.subr.mxu0 0.0
      %281 = vmatpush1.msra.mxu0 0.0
      %282 = vmatprep.subr.mxu0 0.0
      %283 = vmatpush1.msra.mxu0 0.0
      %284 = vmatprep.subr.mxu0 0.0
      %285 = vmatpush1.msra.mxu0 0.0
      %286 = vmatprep.subr.mxu0 0.0
      %287 = vmatpush1.msra.mxu0 0.0
      %288 = vmatprep.subr.mxu0 0.0
      %289 = vmatpush1.msra.mxu0 0.0
      %290 = vmatprep.subr.mxu0 0.0
      %291 = vmatpush1.msra.mxu0 0.0
      %292 = vmatprep.subr.mxu0 0.0
      %293 = vmatpush1.msra.mxu0 0.0
      %294 = vmatprep.subr.mxu0 0.0
      %295 = vmatpush1.msra.mxu0 0.0
      %296 = vmatprep.subr.mxu0 0.0
      %297 = vmatpush1.msra.mxu0 0.0
      %298 = vmatprep.subr.mxu0 0.0
      %299 = vmatpush1.msra.mxu0 0.0
      %300 = vmatprep.subr.mxu0 0.0
      %301 = vmatpush1.msra.mxu0 0.0
      %302 = vmatprep.subr.mxu0 0.0
      %303 = vmatpush1.msra.mxu0 %v178
      %304 = vmatprep.subr.mxu0 0.0
      %305 = vmatpush2.msra.mxu0 0.0
      %306 = vmatprep.subr.mxu0 0.0
      %307 = vmatpush2.msra.mxu0 0.0
      %308 = vmatprep.subr.mxu0 0.0
      %309 = vmatpush2.msra.mxu0 0.0
      %310 = vmatprep.subr.mxu0 0.0
      %311 = vmatpush2.msra.mxu0 0.0
      %312 = vmatprep.subr.mxu0 0.0
      %313 = vmatpush2.msra.mxu0 0.0
      %314 = vmatprep.subr.mxu0 0.0
      %315 = vmatpush2.msra.mxu0 0.0
      %316 = vmatprep.subr.mxu0 0.0
      %317 = vmatpush2.msra.mxu0 0.0
      %318 = vmatprep.subr.mxu0 0.0
      %319 = vmatpush2.msra.mxu0 0.0
      %320 = vmatprep.subr.mxu0 0.0
      %321 = vmatpush2.msra.mxu0 0.0
      %322 = vmatprep.subr.mxu0 0.0
      %323 = vmatpush2.msra.mxu0 0.0
      %324 = vmatprep.subr.mxu0 0.0
      %325 = vmatpush2.msra.mxu0 0.0
      %326 = vmatprep.subr.mxu0 0.0
      %327 = vmatpush2.msra.mxu0 0.0
      %328 = vmatprep.subr.mxu0 0.0
      %329 = vmatpush2.msra.mxu0 0.0
      %330 = vmatprep.subr.mxu0 0.0
      %331 = vmatpush2.msra.mxu0 0.0
      %332 = vmatprep.subr.mxu0 0.0
      %333 = vmatpush2.msra.mxu0 0.0
      %334 = vmatprep.subr.mxu0 0.0
      %335 = vmatpush2.msra.mxu0 0.0
      %336 = vmatprep.mubr.f32.mxu0 0.0
      %337 = vmatmul.mubr.f32.gmra.mxu0 %v270
      %v338 = vpop.f32.mrf.mxu0
      %v339 = vadd.f32 0.0, %v338
      %v340 = vpop.f32.mrf.mxu0
      %341 = vdwg.mxu0
      %v342 = vpack.c.bf16 %v339, %v339
      %v343 = vld [vmem:[#allocation8] sm:$0xf]
      %v344 = vld [vmem:[#allocation8 + $0x4] sm:$0xf]
      %v345 = vld [vmem:[#allocation8 + $0x8] sm:$0xf]
      %v346 = vld [vmem:[#allocation8 + $0xc] sm:$0xf]
      %v351 = vunpack.c.l.b16 %v343
      %v352 = vunpack.c.l.b16 %v344
      %v353 = vunpack.c.l.b16 %v345
      %v354 = vunpack.c.l.b16 %v346
      %v355 = vpack.c.b16 %v352, %v351
      %v356 = vpack.c.b16 %v354, %v353
      %v360 = vsel %vm179, %v342, 0
      %362 = vmatprep.subr.bf16.mxu0 0
      %363 = vmatpush1.bf16.msra.mxu0 0
      %364 = vmatprep.subr.bf16.mxu0 0
      %365 = vmatpush1.bf16.msra.mxu0 0
      %366 = vmatprep.subr.bf16.mxu0 0
      %367 = vmatpush1.bf16.msra.mxu0 0
      %368 = vmatprep.subr.bf16.mxu0 0
      %369 = vmatpush1.bf16.msra.mxu0 0
      %370 = vmatprep.subr.bf16.mxu0 0
      %371 = vmatpush1.bf16.msra.mxu0 0
      %372 = vmatprep.subr.bf16.mxu0 0
      %373 = vmatpush1.bf16.msra.mxu0 0
      %374 = vmatprep.subr.bf16.mxu0 0
      %375 = vmatpush1.bf16.msra.mxu0 %v356
      %376 = vmatprep.subr.bf16.mxu0 0
      %377 = vmatpush1.bf16.msra.mxu0 %v355
      %378 = vmatprep.subr.bf16.mxu0 0
      %379 = vmatpush2.bf16.msra.mxu0 0
      %380 = vmatprep.subr.bf16.mxu0 0
      %381 = vmatpush2.bf16.msra.mxu0 0
      %382 = vmatprep.subr.bf16.mxu0 0
      %383 = vmatpush2.bf16.msra.mxu0 0
      %384 = vmatprep.subr.bf16.mxu0 0
      %385 = vmatpush2.bf16.msra.mxu0 0
      %386 = vmatprep.subr.bf16.mxu0 0
      %387 = vmatpush2.bf16.msra.mxu0 0
      %388 = vmatprep.subr.bf16.mxu0 0
      %389 = vmatpush2.bf16.msra.mxu0 0
      %390 = vmatprep.subr.bf16.mxu0 0
      %391 = vmatpush2.bf16.msra.mxu0 0
      %392 = vmatprep.subr.bf16.mxu0 0
      %393 = vmatpush2.bf16.msra.mxu0 0
      %394 = vmatprep.mubr.bf16.mxu0 0
      %395 = vmatmul.mubr.bf16.gmra.mxu0 %v360
      %v396 = vpop.f32.mrf.mxu0
      %v397 = vadd.f32 0.0, %v396
      %v398 = vpop.f32.mrf.mxu0
      %v399 = vpop.f32.mrf.mxu0
      %v400 = vpop.f32.mrf.mxu0
      %401 = vdwg.mxu0
      %v402 = vadd.f32 %v173, %v397
      %v403 = vxor.u32 %v402, 2147483648
      %v404 = vmul.f32 %v403, 1.442695
      %v405 = vpow.pop %v404
      %v406 = vadd.f32 %v405, 1.0
      %v407 = vrcp.pop %v406
      %v408 = vmul.f32 1.0, %v407
      %v409 = vtanh.pop %v402
      %411 = vrot.lane.b32.xlu0 %v98, 32
      %v412 = vpop.permute.xlu0 %411
      %v414 = vmul.f32 %v408, %v412
      %416 = vrot.lane.b32.xlu0 %v409, 64
      %v417 = vpop.permute.xlu0 %416
      %v419 = vmul.f32 %v408, %v417
      %421 = vrot.lane.b32.xlu0 %v419, 32
      %v422 = vpop.permute.xlu0 %421
      %v424 = vadd.f32 %v414, %v422
      %v425 = vtanh.pop %v424
      %427 = vrot.lane.b32.xlu0 %v425, 64
      %v428 = vpop.permute.xlu0 %427
      %v430 = vmul.f32 %v408, %v428
      %432 = vrot.lane.b32.xlu0 %v430, 32
      %v433 = vpop.permute.xlu0 %432
      %vm435 = vcmask 253952
      %436 = vst.msk [vmem:[#allocation12] sm:$0x1] %vm435, %v433
      %438 = vrot.lane.b32.xlu0 %v424, 96
      %v439 = vpop.permute.xlu0 %438
      %441 = vst.msk [vmem:[#allocation12 + $0x1] sm:$0x1] %vm435, %v439
      %442 = vst.msk [vmem:[#allocation12 + $0x2] sm:$0x1] %vm256, %v267
    $region49: #{tpu_custom_call.1} parent=1 // pred_fallthru
      _
    %v443 = vld [vmem:[#allocation12] sm:$0x1]
    %v444 = vpack.c.bf16 %v443, %v443
    %v445 = vld [vmem:[#allocation10] sm:$0xf]
    %v446 = vld [vmem:[#allocation10 + $0x4] sm:$0xf]
    %v447 = vld [vmem:[#allocation10 + $0x8] sm:$0xf]
    %v448 = vld [vmem:[#allocation10 + $0xc] sm:$0xf]
    %v449 = vld [vmem:[%s5] sm:$0x1]
    %v454 = vunpack.c.l.b16 %v445
    %v455 = vunpack.c.l.b16 %v446
    %v456 = vunpack.c.l.b16 %v447
    %v457 = vunpack.c.l.b16 %v448
    %v458 = vpack.c.b16 %v455, %v454
    %v459 = vpack.c.b16 %v457, %v456
    %vm462 = vcmask 261120
    %v464 = vsel %vm462, %v444, 0
    %466 = vmatprep.subr.bf16.mxu0 0
    %467 = vmatpush1.bf16.msra.mxu0 0
    %468 = vmatprep.subr.bf16.mxu0 0
    %469 = vmatpush1.bf16.msra.mxu0 0
    %470 = vmatprep.subr.bf16.mxu0 0
    %471 = vmatpush1.bf16.msra.mxu0 0
    %472 = vmatprep.subr.bf16.mxu0 0
    %473 = vmatpush1.bf16.msra.mxu0 0
    %474 = vmatprep.subr.bf16.mxu0 0
    %475 = vmatpush1.bf16.msra.mxu0 0
    %476 = vmatprep.subr.bf16.mxu0 0
    %477 = vmatpush1.bf16.msra.mxu0 0
    %478 = vmatprep.subr.bf16.mxu0 0
    %479 = vmatpush1.bf16.msra.mxu0 %v459
    %480 = vmatprep.subr.bf16.mxu0 0
    %481 = vmatpush1.bf16.msra.mxu0 %v458
    %482 = vmatprep.subr.bf16.mxu0 0
    %483 = vmatpush2.bf16.msra.mxu0 0
    %484 = vmatprep.subr.bf16.mxu0 0
    %485 = vmatpush2.bf16.msra.mxu0 0
    %486 = vmatprep.subr.bf16.mxu0 0
    %487 = vmatpush2.bf16.msra.mxu0 0
    %488 = vmatprep.subr.bf16.mxu0 0
    %489 = vmatpush2.bf16.msra.mxu0 0
    %490 = vmatprep.subr.bf16.mxu0 0
    %491 = vmatpush2.bf16.msra.mxu0 0
    %492 = vmatprep.subr.bf16.mxu0 0
    %493 = vmatpush2.bf16.msra.mxu0 0
    %494 = vmatprep.subr.bf16.mxu0 0
    %495 = vmatpush2.bf16.msra.mxu0 0
    %496 = vmatprep.subr.bf16.mxu0 0
    %497 = vmatpush2.bf16.msra.mxu0 0
    %498 = vmatprep.mubr.bf16.mxu0 0
    %499 = vmatmul.mubr.bf16.gmra.mxu0 %v464
    %v500 = vpop.f32.mrf.mxu0
    %v501 = vadd.f32 %v449, %v500
    %v502 = vpop.f32.mrf.mxu0
    %v503 = vpop.f32.mrf.mxu0
    %v504 = vpop.f32.mrf.mxu0
    %505 = vdwg.mxu0
    %vm506 = vcmask 253952
    %507 = vst.msk [vmem:[#allocation11] sm:$0x1] %vm506, %v501
    // Predicated region
    $region50: #{tpu_custom_call.1} parent=1 // pred_check
      _
    $region51: #{tpu_custom_call.1} parent=1 // pred_check_branch
      %509 = sbr.rel (0) target = $region53
    $region52: #{tpu_custom_call.1} parent=1 // pred_region
      %s511 = ssub.s32 16, 16
      %512 = vsyncadd [#allocation4], %s511
      %s514 = sshll.u32 [#allocation11], 4
      %s515 = int_to_ptr.vmem [resolvable:$true] %s514
      %517 = dma.vmem_to_hbm [thread:$0]  %s515, 16, %s6, [#allocation4]
    $region53: #{tpu_custom_call.1} parent=1 // pred_fallthru
      _
    // Predicated region
    $region54: #{tpu_custom_call.1} parent=1 // pred_check
      _
    $region55: #{tpu_custom_call.1} parent=1 // pred_check_branch
      %519 = sbr.rel (0) target = $region57
    $region56: #{tpu_custom_call.1} parent=1 // pred_region
      %s521 = ssub.s32 128, 128
      %522 = vsyncadd [#allocation13], %s521
      %s524 = sshll.u32 [#allocation12], 4
      %s525 = int_to_ptr.vmem [resolvable:$true] %s524
      %527 = dma.vmem_to_hbm [thread:$0]  %s525, 128, %s7, [#allocation13]
    $region57: #{tpu_custom_call.1} parent=1 // pred_fallthru
      _
    // Predicated region
    $region58: #{tpu_custom_call.1} parent=1 // pred_check
      _
    $region59: #{tpu_custom_call.1} parent=1 // pred_check_branch
      %529 = sbr.rel (0) target = $region61
    $region60: #{tpu_custom_call.1} parent=1 // pred_region
      %530 = dma.done [#allocation4], 16
    $region61: #{tpu_custom_call.1} parent=1 // pred_fallthru
      _
    // Predicated region
    $region62: #{tpu_custom_call.1} parent=1 // pred_check
      _
    $region63: #{tpu_custom_call.1} parent=1 // pred_check_branch
      %532 = sbr.rel (0) target = $region65
    $region64: #{tpu_custom_call.1} parent=1 // pred_region
      %533 = dma.done [#allocation13], 128
    $region65: #{tpu_custom_call.1} parent=1 // pred_fallthru
      _
    %534 = vsyncpa [#allocation3], 1
    %535 = vsyncpa [#allocation6], 1
    %536 = vsyncpa [#allocation9], 1
    %537 = vsyncpa [#allocation4], 1
    %538 = vsyncpa [#allocation13], 1

</llo_original>
